<compile_context>
chip_gen: v6e
topology: v6e:2x2x1
jax: 0.10.0
libtpu: 0.0.40
codegen_flags: <defaults>
</compile_context>

<pallas_src>
import functools

import jax
import jax.numpy as jnp
from jax.experimental import pallas as pl
from jax.experimental.pallas import tpu as pltpu


# --------------------------------------------------------------------------- #
# Kernel
# --------------------------------------------------------------------------- #
def _rnn_als_kernel(pre_ref, whh_ref, item_ref, out_ref, h_ref, *,
                    pack, dim, rows_per_chunk, total_steps, needs_mask,
                    interleave):
    """One grid step = `rows_per_chunk * pack` recurrence steps of one batch block.

    pre_ref : (rows_per_chunk, bt, pack*dim)  lane-packed x_t@W_ih^T + b, time-major
    whh_ref : (dim, dim)                      W_hh^T (so h @ whh == h @ W_hh.T)
    item_ref: (bt, dim)                       candidate-item embedding
    out_ref : (bt, 1)                         sigmoid(<h_T, item>)
    h_ref   : (bt, dim) f32 VMEM scratch      hidden state carried across T-chunks
    """
    t_chunk = pl.program_id(1)
    steps_per_chunk = rows_per_chunk * pack
    base = t_chunk * steps_per_chunk
    bt = h_ref.shape[0]

    @pl.when(t_chunk == 0)
    def _init():
        h_ref[...] = jnp.zeros_like(h_ref)

    whh = whh_ref[...]                        # load weights once, reuse per step

    def run_chain(h, lo, hi):
        for r in range(rows_per_chunk):
            # One vld per `pack` recurrence steps (128-lane dense row).
            row = pre_ref[r][lo:hi, :]        # (hi-lo, pack*dim)
            for k in range(pack):
                x_t = row[:, k * dim:(k + 1) * dim]
                h_new = jnp.tanh(
                    x_t + jnp.dot(h, whh, preferred_element_type=jnp.float32))
                if needs_mask:
                    # Padded tail steps (T not a multiple of the chunk) are no-ops.
                    h_new = jnp.where(base + (r * pack + k) < total_steps,
                                      h_new, h)
                h = h_new
        return h

    if interleave:
        # Two independent chains (disjoint batch rows) in one straight-line
        # body: the scheduler overlaps MXU / EUP latency of one with the other.
        half = bt // 2
        h_a = h_ref[0:half, :]
        h_b = h_ref[half:bt, :]
        h_a = run_chain(h_a, 0, half)
        h_b = run_chain(h_b, half, bt)
        h_ref[0:half, :] = h_a
        h_ref[half:bt, :] = h_b
    else:
        h_ref[...] = run_chain(h_ref[...], 0, bt)

    @pl.when(t_chunk == pl.num_programs(1) - 1)
    def _finalize():
        h_fin = h_ref[...]
        score = jnp.sum(h_fin * item_ref[...], axis=1, keepdims=True)  # (bt, 1)
        # NOTE: lane-width-1 store is masked (vst.msk); negligible at small B
        # (review pt. 11), kept for simplicity.
        out_ref[...] = jax.nn.sigmoid(score)


# --------------------------------------------------------------------------- #
# Wrapper
# --------------------------------------------------------------------------- #
def _num_tensorcores_per_chip():
    """v5e/v6e: 1 TensorCore per chip; v7x: 2.  Default to 1 on any doubt."""
    try:
        kind = jax.devices()[0].device_kind.lower()
    except Exception:
        return 1
    return 2 if any(s in kind for s in ("v7", "7x")) else 1


def _renorm_rows(e, max_norm=1.0, eps=1e-7):
    """PyTorch nn.Embedding(max_norm=1) renorm, applied to gathered rows only."""
    n = jnp.linalg.norm(e, axis=-1, keepdims=True)
    return e * jnp.where(n > max_norm, max_norm / (n + eps), 1.0)


@jax.jit
def rnn_als_rec_forward(x_ids, item_ids, emb_weight, w_ih, w_hh, b_ih, b_hh):
    """Forward pass matching RNN_ALS_rec.forward(x, item)."""
    B, T = x_ids.shape
    D = emb_weight.shape[1]

    # Gather first, then renorm only the rows actually used.
    item_embs = _renorm_rows(jnp.take(emb_weight, x_ids, axis=0))      # (B, T, D)
    one_item = _renorm_rows(jnp.take(emb_weight, item_ids, axis=0))    # (B, D)

    # Hoisted input projection (no recurrence dependence): one GEMM, time-major.
    # pre[t, b, :] = item_embs[b, t, :] @ W_ih^T + (b_ih + b_hh)
    pre = jnp.einsum("btd,kd->tbk", item_embs, w_ih) + (b_ih + b_hh)
    pre = pre.astype(jnp.float32)
    # TODO(synk): bf16 operands (pre / w_hh / one_item) would halve DMA bytes and
    # make the per-step MXU matmul single-pass, but the recurrence drift breaks
    # the 1e-5 check vs. the f32 reference; keep f32 carry + operands here.

    # ---- lane packing: pack `pack` timesteps per 128-lane row when D < 128 ----
    pack = 128 // D if (D < 128 and 128 % D == 0) else 1

    # ---- batch blocking, gated on TensorCore count ----------------------------
    num_cores = _num_tensorcores_per_chip()
    batch_block = B
    if num_cores > 1 and B % (num_cores * 8) == 0:
        batch_block = B // num_cores          # one independent recurrence per TC
    while batch_block > 256 and batch_block % 2 == 0:
        batch_block //= 2                     # bound rows per block / VMEM
    num_bb = B // batch_block

    # ---- time chunking: stream pre_x chunks behind compute for long T ---------
    rows_packed = pl.cdiv(T, pack)
    bytes_per_row = batch_block * max(pack * D, 128) * 4
    max_rows_vmem = max(1, (2 * 1024 * 1024) // bytes_per_row)   # ~2 MiB / buffer
    max_rows_unroll = max(1, 128 // pack)                         # <=128 steps/chunk
    rows_per_chunk = max(1, min(rows_packed, max_rows_vmem, max_rows_unroll))
    rows_pad = pl.cdiv(rows_packed, rows_per_chunk) * rows_per_chunk
    num_t_chunks = rows_pad // rows_per_chunk
    T_pad = rows_pad * pack
    needs_mask = (T_pad != T)

    if T_pad != T:
        pre = jnp.pad(pre, ((0, T_pad - T), (0, 0), (0, 0)))
    packed = pre.reshape(rows_pad, pack, B, D).transpose(0, 2, 1, 3)
    packed = packed.reshape(rows_pad, B, pack * D)                # lane-dense

    # Interleave two independent chains only when each gets >= 8 full sublanes.
    interleave = (batch_block % 16 == 0)

    kernel = functools.partial(
        _rnn_als_kernel, pack=pack, dim=D, rows_per_chunk=rows_per_chunk,
        total_steps=T, needs_mask=needs_mask, interleave=interleave)

    logits = pl.pallas_call(
        kernel,
        out_shape=jax.ShapeDtypeStruct((B, 1), jnp.float32),
        grid=(num_bb, num_t_chunks),
        in_specs=[
            pl.BlockSpec((rows_per_chunk, batch_block, pack * D),
                         lambda b, t: (t, b, 0)),
            pl.BlockSpec((D, D), lambda b, t: (0, 0)),
            pl.BlockSpec((batch_block, D), lambda b, t: (b, 0)),
        ],
        out_specs=pl.BlockSpec((batch_block, 1), lambda b, t: (b, 0)),
        scratch_shapes=[pltpu.VMEM((batch_block, D), jnp.float32)],
        compiler_params=pltpu.CompilerParams(
            dimension_semantics=("parallel", "arbitrary"),
        ),
    )(packed, w_hh.T.astype(jnp.float32), one_item.astype(jnp.float32))

    return logits[:, 0]  # (B,)


# --------------------------------------------------------------------------- #
# Pure-JAX reference (mirrors the PyTorch module)
# --------------------------------------------------------------------------- #
def _reference_forward(x_ids, item_ids, emb_weight, w_ih, w_hh, b_ih, b_hh):
    item_embs = _renorm_rows(jnp.take(emb_weight, x_ids, axis=0))      # (B, T, D)
    one_item = _renorm_rows(jnp.take(emb_weight, item_ids, axis=0))    # (B, D)
    B, T, D = item_embs.shape
    h = jnp.zeros((B, D), jnp.float32)
    for t in range(T):
        h = jnp.tanh(item_embs[:, t, :] @ w_ih.T + h @ w_hh.T + b_ih + b_hh)
    return jax.nn.sigmoid(jnp.sum(h * one_item, axis=1))


if __name__ == "__main__":
    # Small, deterministic configuration.
    n_items, dim = 50, 32   # dim -> D, RNN hidden size = D
    B, T = 8, 8             # batch, sequence length

    key = jax.random.PRNGKey(0)
    k_emb, k_wih, k_whh, k_bih, k_bhh, k_x, k_item = jax.random.split(key, 7)

    # nn.Embedding init: N(0, 1)
    emb_weight = jax.random.normal(k_emb, (n_items, dim), dtype=jnp.float32)
    # nn.RNN init: uniform(-1/sqrt(H), 1/sqrt(H))
    bound = 1.0 / jnp.sqrt(jnp.float32(dim))
    w_ih = jax.random.uniform(k_wih, (dim, dim), jnp.float32, -bound, bound)
    w_hh = jax.random.uniform(k_whh, (dim, dim), jnp.float32, -bound, bound)
    b_ih = jax.random.uniform(k_bih, (dim,), jnp.float32, -bound, bound)
    b_hh = jax.random.uniform(k_bhh, (dim,), jnp.float32, -bound, bound)

    # Integer inputs: sequence of item ids and one candidate item per row.
    x_ids = jax.random.randint(k_x, (B, T), 0, n_items, dtype=jnp.int32)
    item_ids = jax.random.randint(k_item, (B,), 0, n_items, dtype=jnp.int32)

    out = rnn_als_rec_forward(x_ids, item_ids, emb_weight, w_ih, w_hh, b_ih, b_hh)
    out = jax.block_until_ready(out)

    ref = _reference_forward(x_ids, item_ids, emb_weight, w_ih, w_hh, b_ih, b_hh)
    assert out.shape == (B,)
    assert jnp.allclose(out, ref, atol=1e-5, rtol=1e-5), (out, ref)

    print("KERNEL_OK")
</pallas_src>

<mosaic_0001>
module attributes {stable_mosaic.version = 11 : i64} {
  func.func @_rnn_als_kernel(%arg0: i32, %arg1: i32, %arg2: memref<2x8x128xf32, #tpu.memory_space<vmem>>, %arg3: memref<32x32xf32, #tpu.memory_space<vmem>>, %arg4: memref<8x32xf32, #tpu.memory_space<vmem>>, %arg5: memref<8x1xf32, #tpu.memory_space<vmem>>, %arg6: memref<8x32xf32, #tpu.memory_space<vmem>>) attributes {dimension_semantics = [#tpu.dimension_semantics<parallel>, #tpu.dimension_semantics<arbitrary>], iteration_bounds = array<i64: 1, 1>, scalar_prefetch = 0 : i64, scratch_operands = 1 : i64, tpu.core_type = #tpu.core_type<tc>, window_params = [{transform_indices = @transform_0, window_bounds = array<i64: 2, 8, 128>}, {pipeline_mode = #tpu.pipeline_mode<synchronous>, transform_indices = @transform_1, window_bounds = array<i64: 32, 32>}, {transform_indices = @transform_2, window_bounds = array<i64: 8, 32>}, {transform_indices = @transform_3, window_bounds = array<i64: 8, 1>}]} {
    %c0_i32 = arith.constant 0 : i32
    %0 = arith.cmpi eq, %arg1, %c0_i32 : i32
    %1 = arith.extui %0 : i1 to i32
    %c0_i32_0 = arith.constant 0 : i32
    %2 = arith.cmpi ne, %1, %c0_i32_0 : i32
    scf.if %2 {
      %cst_20 = arith.constant 0.000000e+00 : f32
      %45 = vector.broadcast %cst_20 : f32 to vector<8x32xf32>
      %c0_21 = arith.constant 0 : index
      %c0_22 = arith.constant 0 : index
      %46 = vector.load %arg6[%c0_21, %c0_22] : memref<8x32xf32, #tpu.memory_space<vmem>>, vector<8x32xf32>
      tpu.vector_store %arg6[%c0_21, %c0_22], %45 {strides = array<i32>} : memref<8x32xf32, #tpu.memory_space<vmem>>, vector<8x32xf32>,
    } else {
    }
    %c0 = arith.constant 0 : index
    %c0_1 = arith.constant 0 : index
    %3 = vector.load %arg3[%c0, %c0_1] : memref<32x32xf32, #tpu.memory_space<vmem>>, vector<32x32xf32>
    %c0_2 = arith.constant 0 : index
    %c0_3 = arith.constant 0 : index
    %4 = vector.load %arg6[%c0_2, %c0_3] : memref<8x32xf32, #tpu.memory_space<vmem>>, vector<8x32xf32>
    %c0_4 = arith.constant 0 : index
    %c0_5 = arith.constant 0 : index
    %c0_6 = arith.constant 0 : index
    %5 = vector.load %arg2[%c0_4, %c0_5, %c0_6] : memref<2x8x128xf32, #tpu.memory_space<vmem>>, vector<1x8x128xf32>
    %6 = vector.shape_cast %5 : vector<1x8x128xf32> to vector<8x128xf32>
    %7 = vector.extract_strided_slice %6 {offsets = [0, 0], sizes = [8, 32], strides = [1, 1]} : vector<8x128xf32> to vector<8x32xf32>
    %cst = arith.constant dense<0.000000e+00> : vector<8x32xf32>
    %8 = tpu.matmul %4, %3, %cst {dimension_numbers = #tpu.dot_dimension_numbers<[1], [0], [0], [1], [0, 0, 1, 1], [], []>} : vector<8x32xf32>, vector<32x32xf32>, vector<8x32xf32> -> vector<8x32xf32>
    %9 = arith.addf %7, %8 : vector<8x32xf32>
    %10 = math.tanh %9 : vector<8x32xf32>
    %11 = vector.extract_strided_slice %6 {offsets = [0, 32], sizes = [8, 32], strides = [1, 1]} : vector<8x128xf32> to vector<8x32xf32>
    %cst_7 = arith.constant dense<0.000000e+00> : vector<8x32xf32>
    %12 = tpu.matmul %10, %3, %cst_7 {dimension_numbers = #tpu.dot_dimension_numbers<[1], [0], [0], [1], [0, 0, 1, 1], [], []>} : vector<8x32xf32>, vector<32x32xf32>, vector<8x32xf32> -> vector<8x32xf32>
    %13 = arith.addf %11, %12 : vector<8x32xf32>
    %14 = math.tanh %13 : vector<8x32xf32>
    %15 = vector.extract_strided_slice %6 {offsets = [0, 64], sizes = [8, 32], strides = [1, 1]} : vector<8x128xf32> to vector<8x32xf32>
    %cst_8 = arith.constant dense<0.000000e+00> : vector<8x32xf32>
    %16 = tpu.matmul %14, %3, %cst_8 {dimension_numbers = #tpu.dot_dimension_numbers<[1], [0], [0], [1], [0, 0, 1, 1], [], []>} : vector<8x32xf32>, vector<32x32xf32>, vector<8x32xf32> -> vector<8x32xf32>
    %17 = arith.addf %15, %16 : vector<8x32xf32>
    %18 = math.tanh %17 : vector<8x32xf32>
    %19 = vector.extract_strided_slice %6 {offsets = [0, 96], sizes = [8, 32], strides = [1, 1]} : vector<8x128xf32> to vector<8x32xf32>
    %cst_9 = arith.constant dense<0.000000e+00> : vector<8x32xf32>
    %20 = tpu.matmul %18, %3, %cst_9 {dimension_numbers = #tpu.dot_dimension_numbers<[1], [0], [0], [1], [0, 0, 1, 1], [], []>} : vector<8x32xf32>, vector<32x32xf32>, vector<8x32xf32> -> vector<8x32xf32>
    %21 = arith.addf %19, %20 : vector<8x32xf32>
    %22 = math.tanh %21 : vector<8x32xf32>
    %c1 = arith.constant 1 : index
    %c0_10 = arith.constant 0 : index
    %c0_11 = arith.constant 0 : index
    %23 = vector.load %arg2[%c1, %c0_10, %c0_11] : memref<2x8x128xf32, #tpu.memory_space<vmem>>, vector<1x8x128xf32>
    %24 = vector.shape_cast %23 : vector<1x8x128xf32> to vector<8x128xf32>
    %25 = vector.extract_strided_slice %24 {offsets = [0, 0], sizes = [8, 32], strides = [1, 1]} : vector<8x128xf32> to vector<8x32xf32>
    %cst_12 = arith.constant dense<0.000000e+00> : vector<8x32xf32>
    %26 = tpu.matmul %22, %3, %cst_12 {dimension_numbers = #tpu.dot_dimension_numbers<[1], [0], [0], [1], [0, 0, 1, 1], [], []>} : vector<8x32xf32>, vector<32x32xf32>, vector<8x32xf32> -> vector<8x32xf32>
    %27 = arith.addf %25, %26 : vector<8x32xf32>
    %28 = math.tanh %27 : vector<8x32xf32>
    %29 = vector.extract_strided_slice %24 {offsets = [0, 32], sizes = [8, 32], strides = [1, 1]} : vector<8x128xf32> to vector<8x32xf32>
    %cst_13 = arith.constant dense<0.000000e+00> : vector<8x32xf32>
    %30 = tpu.matmul %28, %3, %cst_13 {dimension_numbers = #tpu.dot_dimension_numbers<[1], [0], [0], [1], [0, 0, 1, 1], [], []>} : vector<8x32xf32>, vector<32x32xf32>, vector<8x32xf32> -> vector<8x32xf32>
    %31 = arith.addf %29, %30 : vector<8x32xf32>
    %32 = math.tanh %31 : vector<8x32xf32>
    %33 = vector.extract_strided_slice %24 {offsets = [0, 64], sizes = [8, 32], strides = [1, 1]} : vector<8x128xf32> to vector<8x32xf32>
    %cst_14 = arith.constant dense<0.000000e+00> : vector<8x32xf32>
    %34 = tpu.matmul %32, %3, %cst_14 {dimension_numbers = #tpu.dot_dimension_numbers<[1], [0], [0], [1], [0, 0, 1, 1], [], []>} : vector<8x32xf32>, vector<32x32xf32>, vector<8x32xf32> -> vector<8x32xf32>
    %35 = arith.addf %33, %34 : vector<8x32xf32>
    %36 = math.tanh %35 : vector<8x32xf32>
    %37 = vector.extract_strided_slice %24 {offsets = [0, 96], sizes = [8, 32], strides = [1, 1]} : vector<8x128xf32> to vector<8x32xf32>
    %cst_15 = arith.constant dense<0.000000e+00> : vector<8x32xf32>
    %38 = tpu.matmul %36, %3, %cst_15 {dimension_numbers = #tpu.dot_dimension_numbers<[1], [0], [0], [1], [0, 0, 1, 1], [], []>} : vector<8x32xf32>, vector<32x32xf32>, vector<8x32xf32> -> vector<8x32xf32>
    %39 = arith.addf %37, %38 : vector<8x32xf32>
    %40 = math.tanh %39 : vector<8x32xf32>
    %c0_16 = arith.constant 0 : index
    %c0_17 = arith.constant 0 : index
    %41 = vector.load %arg6[%c0_16, %c0_17] : memref<8x32xf32, #tpu.memory_space<vmem>>, vector<8x32xf32>
    tpu.vector_store %arg6[%c0_16, %c0_17], %40 {strides = array<i32>} : memref<8x32xf32, #tpu.memory_space<vmem>>, vector<8x32xf32>,
    %c0_i32_18 = arith.constant 0 : i32
    %42 = arith.cmpi eq, %arg1, %c0_i32_18 : i32
    %43 = arith.extui %42 : i1 to i32
    %c0_i32_19 = arith.constant 0 : i32
    %44 = arith.cmpi ne, %43, %c0_i32_19 : i32
    scf.if %44 {
      %c0_20 = arith.constant 0 : index
      %c0_21 = arith.constant 0 : index
      %45 = vector.load %arg6[%c0_20, %c0_21] : memref<8x32xf32, #tpu.memory_space<vmem>>, vector<8x32xf32>
      %c0_22 = arith.constant 0 : index
      %c0_23 = arith.constant 0 : index
      %46 = vector.load %arg4[%c0_22, %c0_23] : memref<8x32xf32, #tpu.memory_space<vmem>>, vector<8x32xf32>
      %47 = arith.mulf %45, %46 : vector<8x32xf32>
      %cst_24 = arith.constant dense<0.000000e+00> : vector<8xf32>
      %48 = vector.multi_reduction <add>, %47, %cst_24 [1] : vector<8x32xf32> to vector<8xf32>
      %49 = vector.shape_cast %48 : vector<8xf32> to vector<8x1xf32>
      %50 = arith.negf %49 : vector<8x1xf32>
      %51 = math.exp %50 : vector<8x1xf32>
      %cst_25 = arith.constant 1.000000e+00 : f32
      %52 = vector.broadcast %cst_25 : f32 to vector<8x1xf32>
      %53 = arith.addf %52, %51 : vector<8x1xf32>
      %54 = arith.divf %52, %53 : vector<8x1xf32>
      %c0_26 = arith.constant 0 : index
      %c0_27 = arith.constant 0 : index
      %55 = vector.load %arg5[%c0_26, %c0_27] : memref<8x1xf32, #tpu.memory_space<vmem>>, vector<8x1xf32>
      tpu.vector_store %arg5[%c0_26, %c0_27], %54 {strides = array<i32>} : memref<8x1xf32, #tpu.memory_space<vmem>>, vector<8x1xf32>,
    } else {
    }
    return
  }
  func.func @transform_0(%arg0: i32, %arg1: i32) -> (i32, i32, i32) {
    %c0_i32 = arith.constant 0 : i32
    %c0_i32_0 = arith.constant 0 : i32
    return %arg1, %arg0, %c0_i32 : i32, i32, i32
  }
  func.func @transform_1(%arg0: i32, %arg1: i32) -> (i32, i32) {
    %c0_i32 = arith.constant 0 : i32
    %c0_i32_0 = arith.constant 0 : i32
    %c0_i32_1 = arith.constant 0 : i32
    return %c0_i32, %c0_i32_0 : i32, i32
  }
  func.func @transform_2(%arg0: i32, %arg1: i32) -> (i32, i32) {
    %c0_i32 = arith.constant 0 : i32
    %c0_i32_0 = arith.constant 0 : i32
    return %arg0, %c0_i32 : i32, i32
  }
  func.func @transform_3(%arg0: i32, %arg1: i32) -> (i32, i32) {
    %c0_i32 = arith.constant 0 : i32
    %c0_i32_0 = arith.constant 0 : i32
    return %arg0, %c0_i32 : i32, i32
  }
}

</mosaic_0001>

<llo_original>
// kernel: rnn_als_rec_forward.1
$region0: #{rnn_als_rec_forward.1}
  #allocation0 [shape = 'u32[]', space=smem, size = 0x4, offset = 0x4, fixed_abs, tag = 'smem constant byte address 0x4 - core index']
  #allocation1 [shape = 'u32[144,128]{1,0:T(1,128)}', space=vmem, size = 0x12000, scoped, tag = 'internal scratch']
  #allocation2 [shape = 'f32[8,32]{1,0:T(8,128)}', space=vmem, size = 0x1000, scoped, tag = 'scratch operand']
  %s0 = inlined_call_operand.vmem [shape: f32[2,8,128], index: 0, kind: input, shape index: {}]
  %s1 = inlined_call_operand.vmem [shape: f32[32,32], index: 1, kind: input, shape index: {}]
  %s2 = inlined_call_operand.vmem [shape: f32[8,32], index: 2, kind: input, shape index: {}]
  %s3 = inlined_call_operand.vmem [shape: f32[8,1], index: 3, kind: output, shape index: {}]
  %s4 = sld [smem:[#allocation0]]
  $region30: #{rnn_als_rec_forward.1} parent=0
    _
  %s6 = ssub.s32 1, %s4
  %s7 = scalar_select 0, %s6, %s4
  // Predicated region
  $region2: #{rnn_als_rec_forward.1} parent=0 // pred_check
    _
  $region3: #{rnn_als_rec_forward.1} parent=0 // pred_check_branch
    %9 = sbr.rel (0) target = $region5
  $region4: #{rnn_als_rec_forward.1} parent=0 // pred_region
    _
  $region5: #{rnn_als_rec_forward.1} parent=0 // pred_fallthru
    _
  // Predicated region
  $region6: #{rnn_als_rec_forward.1} parent=0 // pred_check
    _
  $region7: #{rnn_als_rec_forward.1} parent=0 // pred_check_branch
    %11 = sbr.rel (0) target = $region9
  $region8: #{rnn_als_rec_forward.1} parent=0 // pred_region
    _
  $region9: #{rnn_als_rec_forward.1} parent=0 // pred_fallthru
    _
  // Predicated region
  $region10: #{rnn_als_rec_forward.1} parent=0 // pred_check
    _
  $region11: #{rnn_als_rec_forward.1} parent=0 // pred_check_branch
    %13 = sbr.rel (0) target = $region13
  $region12: #{rnn_als_rec_forward.1} parent=0 // pred_region
    _
  $region13: #{rnn_als_rec_forward.1} parent=0 // pred_fallthru
    _
  %p14 = scmp.eq.s32.totalorder 0, 0
  // Predicated region
  $region14: #{rnn_als_rec_forward.1} parent=0 // pred_check
    %p15 = pneg %p14
  $region15: #{rnn_als_rec_forward.1} parent=0 // pred_check_branch
    %17 = sbr.rel (%p15) target = $region17
  $region16: #{rnn_als_rec_forward.1} parent=0 // pred_region
    %vm18 = vcmask 261120
    %19 = vst.msk [vmem:[#allocation2] sm:$0xff] %vm18, 0.0
  $region17: #{rnn_als_rec_forward.1} parent=0 // pred_fallthru
    _
  %v20 = vld [vmem:[%s1] sm:$0xff]
  %v21 = vld [vmem:[%s1 + $0x8] sm:$0xff]
  %v22 = vld [vmem:[%s1 + $0x10] sm:$0xff]
  %v23 = vld [vmem:[%s1 + $0x18] sm:$0xff]
  %v24 = vld [vmem:[#allocation2] sm:$0xff]
  %v25 = vld [vmem:[%s0] sm:$0xff]
  %vm26 = vcmask 261120
  %v28 = vsel %vm26, %v24, 0
  %30 = vmatprep.subr.mxu0 0.0
  %31 = vmatpush1.msra.mxu0 0.0
  %32 = vmatprep.subr.mxu0 0.0
  %33 = vmatpush1.msra.mxu0 0.0
  %34 = vmatprep.subr.mxu0 0.0
  %35 = vmatpush1.msra.mxu0 0.0
  %36 = vmatprep.subr.mxu0 0.0
  %37 = vmatpush1.msra.mxu0 0.0
  %38 = vmatprep.subr.mxu0 0.0
  %39 = vmatpush1.msra.mxu0 0.0
  %40 = vmatprep.subr.mxu0 0.0
  %41 = vmatpush1.msra.mxu0 0.0
  %42 = vmatprep.subr.mxu0 0.0
  %43 = vmatpush1.msra.mxu0 0.0
  %44 = vmatprep.subr.mxu0 0.0
  %45 = vmatpush1.msra.mxu0 0.0
  %46 = vmatprep.subr.mxu0 0.0
  %47 = vmatpush1.msra.mxu0 0.0
  %48 = vmatprep.subr.mxu0 0.0
  %49 = vmatpush1.msra.mxu0 0.0
  %50 = vmatprep.subr.mxu0 0.0
  %51 = vmatpush1.msra.mxu0 0.0
  %52 = vmatprep.subr.mxu0 0.0
  %53 = vmatpush1.msra.mxu0 0.0
  %54 = vmatprep.subr.mxu0 0.0
  %55 = vmatpush1.msra.mxu0 %v23
  %56 = vmatprep.subr.mxu0 0.0
  %57 = vmatpush1.msra.mxu0 %v22
  %58 = vmatprep.subr.mxu0 0.0
  %59 = vmatpush1.msra.mxu0 %v21
  %60 = vmatprep.subr.mxu0 0.0
  %61 = vmatpush1.msra.mxu0 %v20
  %62 = vmatprep.subr.mxu0 0.0
  %63 = vmatpush2.msra.mxu0 0.0
  %64 = vmatprep.subr.mxu0 0.0
  %65 = vmatpush2.msra.mxu0 0.0
  %66 = vmatprep.subr.mxu0 0.0
  %67 = vmatpush2.msra.mxu0 0.0
  %68 = vmatprep.subr.mxu0 0.0
  %69 = vmatpush2.msra.mxu0 0.0
  %70 = vmatprep.subr.mxu0 0.0
  %71 = vmatpush2.msra.mxu0 0.0
  %72 = vmatprep.subr.mxu0 0.0
  %73 = vmatpush2.msra.mxu0 0.0
  %74 = vmatprep.subr.mxu0 0.0
  %75 = vmatpush2.msra.mxu0 0.0
  %76 = vmatprep.subr.mxu0 0.0
  %77 = vmatpush2.msra.mxu0 0.0
  %78 = vmatprep.subr.mxu0 0.0
  %79 = vmatpush2.msra.mxu0 0.0
  %80 = vmatprep.subr.mxu0 0.0
  %81 = vmatpush2.msra.mxu0 0.0
  %82 = vmatprep.subr.mxu0 0.0
  %83 = vmatpush2.msra.mxu0 0.0
  %84 = vmatprep.subr.mxu0 0.0
  %85 = vmatpush2.msra.mxu0 0.0
  %86 = vmatprep.subr.mxu0 0.0
  %87 = vmatpush2.msra.mxu0 0.0
  %88 = vmatprep.subr.mxu0 0.0
  %89 = vmatpush2.msra.mxu0 0.0
  %90 = vmatprep.subr.mxu0 0.0
  %91 = vmatpush2.msra.mxu0 0.0
  %92 = vmatprep.subr.mxu0 0.0
  %93 = vmatpush2.msra.mxu0 0.0
  %94 = vmatprep.mubr.f32.mxu0 0.0
  %95 = vmatmul.mubr.f32.gmra.mxu0 %v28
  %v96 = vpop.f32.mrf.mxu0
  %v97 = vadd.f32 0.0, %v96
  %v98 = vpop.f32.mrf.mxu0
  %99 = vdwg.mxu0
  %v100 = vadd.f32 %v25, %v97
  %v101 = vtanh.pop %v100
  %v103 = vsel %vm26, %v101, 0
  %105 = vmatprep.subr.mxu0 0.0
  %106 = vmatpush1.msra.mxu0 0.0
  %107 = vmatprep.subr.mxu0 0.0
  %108 = vmatpush1.msra.mxu0 0.0
  %109 = vmatprep.subr.mxu0 0.0
  %110 = vmatpush1.msra.mxu0 0.0
  %111 = vmatprep.subr.mxu0 0.0
  %112 = vmatpush1.msra.mxu0 0.0
  %113 = vmatprep.subr.mxu0 0.0
  %114 = vmatpush1.msra.mxu0 0.0
  %115 = vmatprep.subr.mxu0 0.0
  %116 = vmatpush1.msra.mxu0 0.0
  %117 = vmatprep.subr.mxu0 0.0
  %118 = vmatpush1.msra.mxu0 0.0
  %119 = vmatprep.subr.mxu0 0.0
  %120 = vmatpush1.msra.mxu0 0.0
  %121 = vmatprep.subr.mxu0 0.0
  %122 = vmatpush1.msra.mxu0 0.0
  %123 = vmatprep.subr.mxu0 0.0
  %124 = vmatpush1.msra.mxu0 0.0
  %125 = vmatprep.subr.mxu0 0.0
  %126 = vmatpush1.msra.mxu0 0.0
  %127 = vmatprep.subr.mxu0 0.0
  %128 = vmatpush1.msra.mxu0 0.0
  %129 = vmatprep.subr.mxu0 0.0
  %130 = vmatpush1.msra.mxu0 %v23
  %131 = vmatprep.subr.mxu0 0.0
  %132 = vmatpush1.msra.mxu0 %v22
  %133 = vmatprep.subr.mxu0 0.0
  %134 = vmatpush1.msra.mxu0 %v21
  %135 = vmatprep.subr.mxu0 0.0
  %136 = vmatpush1.msra.mxu0 %v20
  %137 = vmatprep.subr.mxu0 0.0
  %138 = vmatpush2.msra.mxu0 0.0
  %139 = vmatprep.subr.mxu0 0.0
  %140 = vmatpush2.msra.mxu0 0.0
  %141 = vmatprep.subr.mxu0 0.0
  %142 = vmatpush2.msra.mxu0 0.0
  %143 = vmatprep.subr.mxu0 0.0
  %144 = vmatpush2.msra.mxu0 0.0
  %145 = vmatprep.subr.mxu0 0.0
  %146 = vmatpush2.msra.mxu0 0.0
  %147 = vmatprep.subr.mxu0 0.0
  %148 = vmatpush2.msra.mxu0 0.0
  %149 = vmatprep.subr.mxu0 0.0
  %150 = vmatpush2.msra.mxu0 0.0
  %151 = vmatprep.subr.mxu0 0.0
  %152 = vmatpush2.msra.mxu0 0.0
  %153 = vmatprep.subr.mxu0 0.0
  %154 = vmatpush2.msra.mxu0 0.0
  %155 = vmatprep.subr.mxu0 0.0
  %156 = vmatpush2.msra.mxu0 0.0
  %157 = vmatprep.subr.mxu0 0.0
  %158 = vmatpush2.msra.mxu0 0.0
  %159 = vmatprep.subr.mxu0 0.0
  %160 = vmatpush2.msra.mxu0 0.0
  %161 = vmatprep.subr.mxu0 0.0
  %162 = vmatpush2.msra.mxu0 0.0
  %163 = vmatprep.subr.mxu0 0.0
  %164 = vmatpush2.msra.mxu0 0.0
  %165 = vmatprep.subr.mxu0 0.0
  %166 = vmatpush2.msra.mxu0 0.0
  %167 = vmatprep.subr.mxu0 0.0
  %168 = vmatpush2.msra.mxu0 0.0
  %169 = vmatprep.mubr.f32.mxu0 0.0
  %170 = vmatmul.mubr.f32.gmra.mxu0 %v103
  %v171 = vpop.f32.mrf.mxu0
  %v172 = vadd.f32 0.0, %v171
  %v173 = vpop.f32.mrf.mxu0
  %174 = vdwg.mxu0
  %176 = vrot.lane.b32.xlu0 %v172, 32
  %v177 = vpop.permute.xlu0 %176
  %v179 = vadd.f32 %v25, %v177
  %v180 = vtanh.pop %v179
  %182 = vrot.lane.b32.xlu0 %v180, 96
  %v183 = vpop.permute.xlu0 %182
  %v184 = vsel %vm26, %v183, 0
  %186 = vmatprep.subr.mxu0 0.0
  %187 = vmatpush1.msra.mxu0 0.0
  %188 = vmatprep.subr.mxu0 0.0
  %189 = vmatpush1.msra.mxu0 0.0
  %190 = vmatprep.subr.mxu0 0.0
  %191 = vmatpush1.msra.mxu0 0.0
  %192 = vmatprep.subr.mxu0 0.0
  %193 = vmatpush1.msra.mxu0 0.0
  %194 = vmatprep.subr.mxu0 0.0
  %195 = vmatpush1.msra.mxu0 0.0
  %196 = vmatprep.subr.mxu0 0.0
  %197 = vmatpush1.msra.mxu0 0.0
  %198 = vmatprep.subr.mxu0 0.0
  %199 = vmatpush1.msra.mxu0 0.0
  %200 = vmatprep.subr.mxu0 0.0
  %201 = vmatpush1.msra.mxu0 0.0
  %202 = vmatprep.subr.mxu0 0.0
  %203 = vmatpush1.msra.mxu0 0.0
  %204 = vmatprep.subr.mxu0 0.0
  %205 = vmatpush1.msra.mxu0 0.0
  %206 = vmatprep.subr.mxu0 0.0
  %207 = vmatpush1.msra.mxu0 0.0
  %208 = vmatprep.subr.mxu0 0.0
  %209 = vmatpush1.msra.mxu0 0.0
  %210 = vmatprep.subr.mxu0 0.0
  %211 = vmatpush1.msra.mxu0 %v23
  %212 = vmatprep.subr.mxu0 0.0
  %213 = vmatpush1.msra.mxu0 %v22
  %214 = vmatprep.subr.mxu0 0.0
  %215 = vmatpush1.msra.mxu0 %v21
  %216 = vmatprep.subr.mxu0 0.0
  %217 = vmatpush1.msra.mxu0 %v20
  %218 = vmatprep.subr.mxu0 0.0
  %219 = vmatpush2.msra.mxu0 0.0
  %220 = vmatprep.subr.mxu0 0.0
  %221 = vmatpush2.msra.mxu0 0.0
  %222 = vmatprep.subr.mxu0 0.0
  %223 = vmatpush2.msra.mxu0 0.0
  %224 = vmatprep.subr.mxu0 0.0
  %225 = vmatpush2.msra.mxu0 0.0
  %226 = vmatprep.subr.mxu0 0.0
  %227 = vmatpush2.msra.mxu0 0.0
  %228 = vmatprep.subr.mxu0 0.0
  %229 = vmatpush2.msra.mxu0 0.0
  %230 = vmatprep.subr.mxu0 0.0
  %231 = vmatpush2.msra.mxu0 0.0
  %232 = vmatprep.subr.mxu0 0.0
  %233 = vmatpush2.msra.mxu0 0.0
  %234 = vmatprep.subr.mxu0 0.0
  %235 = vmatpush2.msra.mxu0 0.0
  %236 = vmatprep.subr.mxu0 0.0
  %237 = vmatpush2.msra.mxu0 0.0
  %238 = vmatprep.subr.mxu0 0.0
  %239 = vmatpush2.msra.mxu0 0.0
  %240 = vmatprep.subr.mxu0 0.0
  %241 = vmatpush2.msra.mxu0 0.0
  %242 = vmatprep.subr.mxu0 0.0
  %243 = vmatpush2.msra.mxu0 0.0
  %244 = vmatprep.subr.mxu0 0.0
  %245 = vmatpush2.msra.mxu0 0.0
  %246 = vmatprep.subr.mxu0 0.0
  %247 = vmatpush2.msra.mxu0 0.0
  %248 = vmatprep.subr.mxu0 0.0
  %249 = vmatpush2.msra.mxu0 0.0
  %250 = vmatprep.mubr.f32.mxu0 0.0
  %251 = vmatmul.mubr.f32.gmra.mxu0 %v184
  %v252 = vpop.f32.mrf.mxu0
  %v253 = vadd.f32 0.0, %v252
  %v254 = vpop.f32.mrf.mxu0
  %255 = vdwg.mxu0
  %257 = vrot.lane.b32.xlu0 %v253, 64
  %v258 = vpop.permute.xlu0 %257
  %v260 = vadd.f32 %v25, %v258
  %v261 = vtanh.pop %v260
  %263 = vrot.lane.b32.xlu0 %v261, 64
  %v264 = vpop.permute.xlu0 %263
  %v265 = vsel %vm26, %v264, 0
  %267 = vmatprep.subr.mxu0 0.0
  %268 = vmatpush1.msra.mxu0 0.0
  %269 = vmatprep.subr.mxu0 0.0
  %270 = vmatpush1.msra.mxu0 0.0
  %271 = vmatprep.subr.mxu0 0.0
  %272 = vmatpush1.msra.mxu0 0.0
  %273 = vmatprep.subr.mxu0 0.0
  %274 = vmatpush1.msra.mxu0 0.0
  %275 = vmatprep.subr.mxu0 0.0
  %276 = vmatpush1.msra.mxu0 0.0
  %277 = vmatprep.subr.mxu0 0.0
  %278 = vmatpush1.msra.mxu0 0.0
  %279 = vmatprep.subr.mxu0 0.0
  %280 = vmatpush1.msra.mxu0 0.0
  %281 = vmatprep.subr.mxu0 0.0
  %282 = vmatpush1.msra.mxu0 0.0
  %283 = vmatprep.subr.mxu0 0.0
  %284 = vmatpush1.msra.mxu0 0.0
  %285 = vmatprep.subr.mxu0 0.0
  %286 = vmatpush1.msra.mxu0 0.0
  %287 = vmatprep.subr.mxu0 0.0
  %288 = vmatpush1.msra.mxu0 0.0
  %289 = vmatprep.subr.mxu0 0.0
  %290 = vmatpush1.msra.mxu0 0.0
  %291 = vmatprep.subr.mxu0 0.0
  %292 = vmatpush1.msra.mxu0 %v23
  %293 = vmatprep.subr.mxu0 0.0
  %294 = vmatpush1.msra.mxu0 %v22
  %295 = vmatprep.subr.mxu0 0.0
  %296 = vmatpush1.msra.mxu0 %v21
  %297 = vmatprep.subr.mxu0 0.0
  %298 = vmatpush1.msra.mxu0 %v20
  %299 = vmatprep.subr.mxu0 0.0
  %300 = vmatpush2.msra.mxu0 0.0
  %301 = vmatprep.subr.mxu0 0.0
  %302 = vmatpush2.msra.mxu0 0.0
  %303 = vmatprep.subr.mxu0 0.0
  %304 = vmatpush2.msra.mxu0 0.0
  %305 = vmatprep.subr.mxu0 0.0
  %306 = vmatpush2.msra.mxu0 0.0
  %307 = vmatprep.subr.mxu0 0.0
  %308 = vmatpush2.msra.mxu0 0.0
  %309 = vmatprep.subr.mxu0 0.0
  %310 = vmatpush2.msra.mxu0 0.0
  %311 = vmatprep.subr.mxu0 0.0
  %312 = vmatpush2.msra.mxu0 0.0
  %313 = vmatprep.subr.mxu0 0.0
  %314 = vmatpush2.msra.mxu0 0.0
  %315 = vmatprep.subr.mxu0 0.0
  %316 = vmatpush2.msra.mxu0 0.0
  %317 = vmatprep.subr.mxu0 0.0
  %318 = vmatpush2.msra.mxu0 0.0
  %319 = vmatprep.subr.mxu0 0.0
  %320 = vmatpush2.msra.mxu0 0.0
  %321 = vmatprep.subr.mxu0 0.0
  %322 = vmatpush2.msra.mxu0 0.0
  %323 = vmatprep.subr.mxu0 0.0
  %324 = vmatpush2.msra.mxu0 0.0
  %325 = vmatprep.subr.mxu0 0.0
  %326 = vmatpush2.msra.mxu0 0.0
  %327 = vmatprep.subr.mxu0 0.0
  %328 = vmatpush2.msra.mxu0 0.0
  %329 = vmatprep.subr.mxu0 0.0
  %330 = vmatpush2.msra.mxu0 0.0
  %331 = vmatprep.mubr.f32.mxu0 0.0
  %332 = vmatmul.mubr.f32.gmra.mxu0 %v265
  %v333 = vpop.f32.mrf.mxu0
  %v334 = vadd.f32 0.0, %v333
  %v335 = vpop.f32.mrf.mxu0
  %336 = vdwg.mxu0
  %338 = vrot.lane.b32.xlu0 %v334, 96
  %v339 = vpop.permute.xlu0 %338
  %v341 = vadd.f32 %v25, %v339
  %v342 = vtanh.pop %v341
  %s343 = scalar_lea.vmem %s0, 8
  %v344 = vld [vmem:[%s343] sm:$0xff]
  %346 = vrot.lane.b32.xlu0 %v342, 32
  %v347 = vpop.permute.xlu0 %346
  %v348 = vsel %vm26, %v347, 0
  %350 = vmatprep.subr.mxu0 0.0
  %351 = vmatpush1.msra.mxu0 0.0
  %352 = vmatprep.subr.mxu0 0.0
  %353 = vmatpush1.msra.mxu0 0.0
  %354 = vmatprep.subr.mxu0 0.0
  %355 = vmatpush1.msra.mxu0 0.0
  %356 = vmatprep.subr.mxu0 0.0
  %357 = vmatpush1.msra.mxu0 0.0
  %358 = vmatprep.subr.mxu0 0.0
  %359 = vmatpush1.msra.mxu0 0.0
  %360 = vmatprep.subr.mxu0 0.0
  %361 = vmatpush1.msra.mxu0 0.0
  %362 = vmatprep.subr.mxu0 0.0
  %363 = vmatpush1.msra.mxu0 0.0
  %364 = vmatprep.subr.mxu0 0.0
  %365 = vmatpush1.msra.mxu0 0.0
  %366 = vmatprep.subr.mxu0 0.0
  %367 = vmatpush1.msra.mxu0 0.0
  %368 = vmatprep.subr.mxu0 0.0
  %369 = vmatpush1.msra.mxu0 0.0
  %370 = vmatprep.subr.mxu0 0.0
  %371 = vmatpush1.msra.mxu0 0.0
  %372 = vmatprep.subr.mxu0 0.0
  %373 = vmatpush1.msra.mxu0 0.0
  %374 = vmatprep.subr.mxu0 0.0
  %375 = vmatpush1.msra.mxu0 %v23
  %376 = vmatprep.subr.mxu0 0.0
  %377 = vmatpush1.msra.mxu0 %v22
  %378 = vmatprep.subr.mxu0 0.0
  %379 = vmatpush1.msra.mxu0 %v21
  %380 = vmatprep.subr.mxu0 0.0
  %381 = vmatpush1.msra.mxu0 %v20
  %382 = vmatprep.subr.mxu0 0.0
  %383 = vmatpush2.msra.mxu0 0.0
  %384 = vmatprep.subr.mxu0 0.0
  %385 = vmatpush2.msra.mxu0 0.0
  %386 = vmatprep.subr.mxu0 0.0
  %387 = vmatpush2.msra.mxu0 0.0
  %388 = vmatprep.subr.mxu0 0.0
  %389 = vmatpush2.msra.mxu0 0.0
  %390 = vmatprep.subr.mxu0 0.0
  %391 = vmatpush2.msra.mxu0 0.0
  %392 = vmatprep.subr.mxu0 0.0
  %393 = vmatpush2.msra.mxu0 0.0
  %394 = vmatprep.subr.mxu0 0.0
  %395 = vmatpush2.msra.mxu0 0.0
  %396 = vmatprep.subr.mxu0 0.0
  %397 = vmatpush2.msra.mxu0 0.0
  %398 = vmatprep.subr.mxu0 0.0
  %399 = vmatpush2.msra.mxu0 0.0
  %400 = vmatprep.subr.mxu0 0.0
  %401 = vmatpush2.msra.mxu0 0.0
  %402 = vmatprep.subr.mxu0 0.0
  %403 = vmatpush2.msra.mxu0 0.0
  %404 = vmatprep.subr.mxu0 0.0
  %405 = vmatpush2.msra.mxu0 0.0
  %406 = vmatprep.subr.mxu0 0.0
  %407 = vmatpush2.msra.mxu0 0.0
  %408 = vmatprep.subr.mxu0 0.0
  %409 = vmatpush2.msra.mxu0 0.0
  %410 = vmatprep.subr.mxu0 0.0
  %411 = vmatpush2.msra.mxu0 0.0
  %412 = vmatprep.subr.mxu0 0.0
  %413 = vmatpush2.msra.mxu0 0.0
  %414 = vmatprep.mubr.f32.mxu0 0.0
  %415 = vmatmul.mubr.f32.gmra.mxu0 %v348
  %v416 = vpop.f32.mrf.mxu0
  %v417 = vadd.f32 0.0, %v416
  %v418 = vpop.f32.mrf.mxu0
  %419 = vdwg.mxu0
  %v420 = vadd.f32 %v344, %v417
  %v421 = vtanh.pop %v420
  %v423 = vsel %vm26, %v421, 0
  %425 = vmatprep.subr.mxu0 0.0
  %426 = vmatpush1.msra.mxu0 0.0
  %427 = vmatprep.subr.mxu0 0.0
  %428 = vmatpush1.msra.mxu0 0.0
  %429 = vmatprep.subr.mxu0 0.0
  %430 = vmatpush1.msra.mxu0 0.0
  %431 = vmatprep.subr.mxu0 0.0
  %432 = vmatpush1.msra.mxu0 0.0
  %433 = vmatprep.subr.mxu0 0.0
  %434 = vmatpush1.msra.mxu0 0.0
  %435 = vmatprep.subr.mxu0 0.0
  %436 = vmatpush1.msra.mxu0 0.0
  %437 = vmatprep.subr.mxu0 0.0
  %438 = vmatpush1.msra.mxu0 0.0
  %439 = vmatprep.subr.mxu0 0.0
  %440 = vmatpush1.msra.mxu0 0.0
  %441 = vmatprep.subr.mxu0 0.0
  %442 = vmatpush1.msra.mxu0 0.0
  %443 = vmatprep.subr.mxu0 0.0
  %444 = vmatpush1.msra.mxu0 0.0
  %445 = vmatprep.subr.mxu0 0.0
  %446 = vmatpush1.msra.mxu0 0.0
  %447 = vmatprep.subr.mxu0 0.0
  %448 = vmatpush1.msra.mxu0 0.0
  %449 = vmatprep.subr.mxu0 0.0
  %450 = vmatpush1.msra.mxu0 %v23
  %451 = vmatprep.subr.mxu0 0.0
  %452 = vmatpush1.msra.mxu0 %v22
  %453 = vmatprep.subr.mxu0 0.0
  %454 = vmatpush1.msra.mxu0 %v21
  %455 = vmatprep.subr.mxu0 0.0
  %456 = vmatpush1.msra.mxu0 %v20
  %457 = vmatprep.subr.mxu0 0.0
  %458 = vmatpush2.msra.mxu0 0.0
  %459 = vmatprep.subr.mxu0 0.0
  %460 = vmatpush2.msra.mxu0 0.0
  %461 = vmatprep.subr.mxu0 0.0
  %462 = vmatpush2.msra.mxu0 0.0
  %463 = vmatprep.subr.mxu0 0.0
  %464 = vmatpush2.msra.mxu0 0.0
  %465 = vmatprep.subr.mxu0 0.0
  %466 = vmatpush2.msra.mxu0 0.0
  %467 = vmatprep.subr.mxu0 0.0
  %468 = vmatpush2.msra.mxu0 0.0
  %469 = vmatprep.subr.mxu0 0.0
  %470 = vmatpush2.msra.mxu0 0.0
  %471 = vmatprep.subr.mxu0 0.0
  %472 = vmatpush2.msra.mxu0 0.0
  %473 = vmatprep.subr.mxu0 0.0
  %474 = vmatpush2.msra.mxu0 0.0
  %475 = vmatprep.subr.mxu0 0.0
  %476 = vmatpush2.msra.mxu0 0.0
  %477 = vmatprep.subr.mxu0 0.0
  %478 = vmatpush2.msra.mxu0 0.0
  %479 = vmatprep.subr.mxu0 0.0
  %480 = vmatpush2.msra.mxu0 0.0
  %481 = vmatprep.subr.mxu0 0.0
  %482 = vmatpush2.msra.mxu0 0.0
  %483 = vmatprep.subr.mxu0 0.0
  %484 = vmatpush2.msra.mxu0 0.0
  %485 = vmatprep.subr.mxu0 0.0
  %486 = vmatpush2.msra.mxu0 0.0
  %487 = vmatprep.subr.mxu0 0.0
  %488 = vmatpush2.msra.mxu0 0.0
  %489 = vmatprep.mubr.f32.mxu0 0.0
  %490 = vmatmul.mubr.f32.gmra.mxu0 %v423
  %v491 = vpop.f32.mrf.mxu0
  %v492 = vadd.f32 0.0, %v491
  %v493 = vpop.f32.mrf.mxu0
  %494 = vdwg.mxu0
  %496 = vrot.lane.b32.xlu0 %v492, 32
  %v497 = vpop.permute.xlu0 %496
  %v499 = vadd.f32 %v344, %v497
  %v500 = vtanh.pop %v499
  %502 = vrot.lane.b32.xlu0 %v500, 96
  %v503 = vpop.permute.xlu0 %502
  %v504 = vsel %vm26, %v503, 0
  %506 = vmatprep.subr.mxu0 0.0
  %507 = vmatpush1.msra.mxu0 0.0
  %508 = vmatprep.subr.mxu0 0.0
  %509 = vmatpush1.msra.mxu0 0.0
  %510 = vmatprep.subr.mxu0 0.0
  %511 = vmatpush1.msra.mxu0 0.0
  %512 = vmatprep.subr.mxu0 0.0
  %513 = vmatpush1.msra.mxu0 0.0
  %514 = vmatprep.subr.mxu0 0.0
  %515 = vmatpush1.msra.mxu0 0.0
  %516 = vmatprep.subr.mxu0 0.0
  %517 = vmatpush1.msra.mxu0 0.0
  %518 = vmatprep.subr.mxu0 0.0
  %519 = vmatpush1.msra.mxu0 0.0
  %520 = vmatprep.subr.mxu0 0.0
  %521 = vmatpush1.msra.mxu0 0.0
  %522 = vmatprep.subr.mxu0 0.0
  %523 = vmatpush1.msra.mxu0 0.0
  %524 = vmatprep.subr.mxu0 0.0
  %525 = vmatpush1.msra.mxu0 0.0
  %526 = vmatprep.subr.mxu0 0.0
  %527 = vmatpush1.msra.mxu0 0.0
  %528 = vmatprep.subr.mxu0 0.0
  %529 = vmatpush1.msra.mxu0 0.0
  %530 = vmatprep.subr.mxu0 0.0
  %531 = vmatpush1.msra.mxu0 %v23
  %532 = vmatprep.subr.mxu0 0.0
  %533 = vmatpush1.msra.mxu0 %v22
  %534 = vmatprep.subr.mxu0 0.0
  %535 = vmatpush1.msra.mxu0 %v21
  %536 = vmatprep.subr.mxu0 0.0
  %537 = vmatpush1.msra.mxu0 %v20
  %538 = vmatprep.subr.mxu0 0.0
  %539 = vmatpush2.msra.mxu0 0.0
  %540 = vmatprep.subr.mxu0 0.0
  %541 = vmatpush2.msra.mxu0 0.0
  %542 = vmatprep.subr.mxu0 0.0
  %543 = vmatpush2.msra.mxu0 0.0
  %544 = vmatprep.subr.mxu0 0.0
  %545 = vmatpush2.msra.mxu0 0.0
  %546 = vmatprep.subr.mxu0 0.0
  %547 = vmatpush2.msra.mxu0 0.0
  %548 = vmatprep.subr.mxu0 0.0
  %549 = vmatpush2.msra.mxu0 0.0
  %550 = vmatprep.subr.mxu0 0.0
  %551 = vmatpush2.msra.mxu0 0.0
  %552 = vmatprep.subr.mxu0 0.0
  %553 = vmatpush2.msra.mxu0 0.0
  %554 = vmatprep.subr.mxu0 0.0
  %555 = vmatpush2.msra.mxu0 0.0
  %556 = vmatprep.subr.mxu0 0.0
  %557 = vmatpush2.msra.mxu0 0.0
  %558 = vmatprep.subr.mxu0 0.0
  %559 = vmatpush2.msra.mxu0 0.0
  %560 = vmatprep.subr.mxu0 0.0
  %561 = vmatpush2.msra.mxu0 0.0
  %562 = vmatprep.subr.mxu0 0.0
  %563 = vmatpush2.msra.mxu0 0.0
  %564 = vmatprep.subr.mxu0 0.0
  %565 = vmatpush2.msra.mxu0 0.0
  %566 = vmatprep.subr.mxu0 0.0
  %567 = vmatpush2.msra.mxu0 0.0
  %568 = vmatprep.subr.mxu0 0.0
  %569 = vmatpush2.msra.mxu0 0.0
  %570 = vmatprep.mubr.f32.mxu0 0.0
  %571 = vmatmul.mubr.f32.gmra.mxu0 %v504
  %v572 = vpop.f32.mrf.mxu0
  %v573 = vadd.f32 0.0, %v572
  %v574 = vpop.f32.mrf.mxu0
  %575 = vdwg.mxu0
  %577 = vrot.lane.b32.xlu0 %v573, 64
  %v578 = vpop.permute.xlu0 %577
  %v580 = vadd.f32 %v344, %v578
  %v581 = vtanh.pop %v580
  %583 = vrot.lane.b32.xlu0 %v581, 64
  %v584 = vpop.permute.xlu0 %583
  %v585 = vsel %vm26, %v584, 0
  %587 = vmatprep.subr.mxu0 0.0
  %588 = vmatpush1.msra.mxu0 0.0
  %589 = vmatprep.subr.mxu0 0.0
  %590 = vmatpush1.msra.mxu0 0.0
  %591 = vmatprep.subr.mxu0 0.0
  %592 = vmatpush1.msra.mxu0 0.0
  %593 = vmatprep.subr.mxu0 0.0
  %594 = vmatpush1.msra.mxu0 0.0
  %595 = vmatprep.subr.mxu0 0.0
  %596 = vmatpush1.msra.mxu0 0.0
  %597 = vmatprep.subr.mxu0 0.0
  %598 = vmatpush1.msra.mxu0 0.0
  %599 = vmatprep.subr.mxu0 0.0
  %600 = vmatpush1.msra.mxu0 0.0
  %601 = vmatprep.subr.mxu0 0.0
  %602 = vmatpush1.msra.mxu0 0.0
  %603 = vmatprep.subr.mxu0 0.0
  %604 = vmatpush1.msra.mxu0 0.0
  %605 = vmatprep.subr.mxu0 0.0
  %606 = vmatpush1.msra.mxu0 0.0
  %607 = vmatprep.subr.mxu0 0.0
  %608 = vmatpush1.msra.mxu0 0.0
  %609 = vmatprep.subr.mxu0 0.0
  %610 = vmatpush1.msra.mxu0 0.0
  %611 = vmatprep.subr.mxu0 0.0
  %612 = vmatpush1.msra.mxu0 %v23
  %613 = vmatprep.subr.mxu0 0.0
  %614 = vmatpush1.msra.mxu0 %v22
  %615 = vmatprep.subr.mxu0 0.0
  %616 = vmatpush1.msra.mxu0 %v21
  %617 = vmatprep.subr.mxu0 0.0
  %618 = vmatpush1.msra.mxu0 %v20
  %619 = vmatprep.subr.mxu0 0.0
  %620 = vmatpush2.msra.mxu0 0.0
  %621 = vmatprep.subr.mxu0 0.0
  %622 = vmatpush2.msra.mxu0 0.0
  %623 = vmatprep.subr.mxu0 0.0
  %624 = vmatpush2.msra.mxu0 0.0
  %625 = vmatprep.subr.mxu0 0.0
  %626 = vmatpush2.msra.mxu0 0.0
  %627 = vmatprep.subr.mxu0 0.0
  %628 = vmatpush2.msra.mxu0 0.0
  %629 = vmatprep.subr.mxu0 0.0
  %630 = vmatpush2.msra.mxu0 0.0
  %631 = vmatprep.subr.mxu0 0.0
  %632 = vmatpush2.msra.mxu0 0.0
  %633 = vmatprep.subr.mxu0 0.0
  %634 = vmatpush2.msra.mxu0 0.0
  %635 = vmatprep.subr.mxu0 0.0
  %636 = vmatpush2.msra.mxu0 0.0
  %637 = vmatprep.subr.mxu0 0.0
  %638 = vmatpush2.msra.mxu0 0.0
  %639 = vmatprep.subr.mxu0 0.0
  %640 = vmatpush2.msra.mxu0 0.0
  %641 = vmatprep.subr.mxu0 0.0
  %642 = vmatpush2.msra.mxu0 0.0
  %643 = vmatprep.subr.mxu0 0.0
  %644 = vmatpush2.msra.mxu0 0.0
  %645 = vmatprep.subr.mxu0 0.0
  %646 = vmatpush2.msra.mxu0 0.0
  %647 = vmatprep.subr.mxu0 0.0
  %648 = vmatpush2.msra.mxu0 0.0
  %649 = vmatprep.subr.mxu0 0.0
  %650 = vmatpush2.msra.mxu0 0.0
  %651 = vmatprep.mubr.f32.mxu0 0.0
  %652 = vmatmul.mubr.f32.gmra.mxu0 %v585
  %v653 = vpop.f32.mrf.mxu0
  %v654 = vadd.f32 0.0, %v653
  %v655 = vpop.f32.mrf.mxu0
  %656 = vdwg.mxu0
  %658 = vrot.lane.b32.xlu0 %v654, 96
  %v659 = vpop.permute.xlu0 %658
  %v661 = vadd.f32 %v344, %v659
  %v662 = vtanh.pop %v661
  %664 = vrot.lane.b32.xlu0 %v662, 32
  %v665 = vpop.permute.xlu0 %664
  %667 = vst.msk [vmem:[#allocation2] sm:$0xff] %vm26, %v665
  // Predicated region
  $region18: #{rnn_als_rec_forward.1} parent=0 // pred_check
    %p668 = pneg %p14
  $region19: #{rnn_als_rec_forward.1} parent=0 // pred_check_branch
    %670 = sbr.rel (%p668) target = $region21
  $region20: #{rnn_als_rec_forward.1} parent=0 // pred_region
    %v671 = vld [vmem:[#allocation2] sm:$0xff]
    %v672 = vld [vmem:[%s2] sm:$0xff]
    %v673 = vmul.f32 %v671, %v672
    %v674 = vsel %vm26, %v673, 0.0
    %675 = vadd.xlane.f32.xlu0 %v674
    %v676 = vpop.xlane.xlu0 %675
    %v677 = vxor.u32 %v676, 2147483648
    %v678 = vmul.f32 %v677, 1.442695
    %v679 = vpow.pop %v678
    %v680 = vadd.f32 %v679, 1.0
    %v681 = vrcp.pop %v680
    %v682 = vmul.f32 1.0, %v681
    %vm683 = vcmask 7168
    %684 = vst.msk [vmem:[%s3] sm:$0xff] %vm683, %v682
  $region21: #{rnn_als_rec_forward.1} parent=0 // pred_fallthru
    _
  // Predicated region
  $region22: #{rnn_als_rec_forward.1} parent=0 // pred_check
    _
  $region23: #{rnn_als_rec_forward.1} parent=0 // pred_check_branch
    %686 = sbr.rel (0) target = $region25
  $region24: #{rnn_als_rec_forward.1} parent=0 // pred_region
    _
  $region25: #{rnn_als_rec_forward.1} parent=0 // pred_fallthru
    _
  // Predicated region
  $region26: #{rnn_als_rec_forward.1} parent=0 // pred_check
    _
  $region27: #{rnn_als_rec_forward.1} parent=0 // pred_check_branch
    %688 = sbr.rel (0) target = $region29
  $region28: #{rnn_als_rec_forward.1} parent=0 // pred_region
    _
  $region29: #{rnn_als_rec_forward.1} parent=0 // pred_fallthru
    _

</llo_original>
